<compile_context>
chip_gen: v6e
topology: v6e:2x2x1
jax: 0.10.0
libtpu: 0.0.40
codegen_flags: <defaults>
</compile_context>

<pallas_src>
import jax
import jax.numpy as jnp
from jax.experimental import pallas as pl
from jax.experimental.pallas import tpu as pltpu

EPS = 1e-5
DIMS = (3, 400, 200, 100, 50, 50, 1)        # true layer widths (PyTorch module)
PAD = (3, 512, 256, 128, 128, 128, 128)     # lane-padded widths (multiples of 128)
MATMUL_DTYPE = jnp.bfloat16                 # MXU operand dtype (f32 accumulation)

# ---- packed f32 vector slab: biases, BN affine, first-layer weight rows ------
_VEC_SEGS = (
    ("b1", PAD[1]), ("b2", PAD[2]), ("b3", PAD[3]), ("b4", PAD[4]),
    ("b5", PAD[5]), ("b6", PAD[6]),
    ("g1", PAD[1]), ("be1", PAD[1]),
    ("g2", PAD[4]), ("be2", PAD[4]),
    ("w1r0", PAD[1]), ("w1r1", PAD[1]), ("w1r2", PAD[1]),
)
_VEC_OFF = {}
_o = 0
for _name, _w in _VEC_SEGS:
    _VEC_OFF[_name] = (_o, _w)
    _o += _w
VEC_LEN = _o                                # 4096 = 32 * 128

# ---- packed bf16 weight slab: w2..w6 at 128-aligned column offsets -----------
_W_SEGS = (
    ("w2", PAD[1], PAD[2]),   # (512, 256)
    ("w3", PAD[2], PAD[3]),   # (256, 128)
    ("w4", PAD[3], PAD[4]),   # (128, 128)
    ("w5", PAD[4], PAD[5]),   # (128, 128)
    ("w6", PAD[5], PAD[6]),   # (128, 128)
)
_W_OFF = {}
_c = 0
for _name, _rows, _cols in _W_SEGS:
    _W_OFF[_name] = (_c, _rows, _cols)
    _c += _cols
W_SLAB_ROWS = PAD[1]                        # 512
W_SLAB_COLS = _c                            # 768


def mlp_kernel(x_ref, w_ref, vec_ref, o_ref):
    n = x_ref.shape[0]
    inv_n = 1.0 / n                          # static: N known at trace time

    def vseg(name):
        off, width = _VEC_OFF[name]
        return vec_ref[:, off:off + width]   # (1, width) lane-aligned view load

    def wseg(name):
        off, rows, cols = _W_OFF[name]
        return w_ref[0:rows, off:off + cols]  # static 128/8-aligned slab slice

    def linear(h, wname, bname):
        # bf16 operands on the MXU, f32 accumulation; bias add stays f32.
        return jnp.dot(h.astype(MATMUL_DTYPE), wseg(wname),
                       preferred_element_type=jnp.float32) + vseg(bname)

    def batchnorm(h, gname, bename):
        # Training-mode BatchNorm1d with one-pass stats; affine folded into a
        # single per-feature scale/shift -> one mul + one add over (N, width).
        s1 = jnp.sum(h, axis=0, keepdims=True)
        s2 = jnp.sum(h * h, axis=0, keepdims=True)
        mean = s1 * inv_n
        var = jnp.maximum(s2 * inv_n - mean * mean, 0.0)   # clamp cancellation
        scale = jax.lax.rsqrt(var + EPS) * vseg(gname)
        shift = vseg(bename) - mean * scale
        return h * scale + shift

    # Layer 1 (K=3): three f32 VPU broadcast multiply-adds, no MXU round-trip.
    x = x_ref[...]                                          # (N, 3) f32
    h = (x[:, 0:1] * vseg("w1r0") + x[:, 1:2] * vseg("w1r1")
         + x[:, 2:3] * vseg("w1r2") + vseg("b1"))
    h = jnp.maximum(h, 0.0)
    h = batchnorm(h, "g1", "be1")
    h = jnp.maximum(linear(h, "w2", "b2"), 0.0)
    h = jnp.maximum(linear(h, "w3", "b3"), 0.0)
    h = jnp.maximum(linear(h, "w4", "b4"), 0.0)
    h = batchnorm(h, "g2", "be2")
    h = jnp.maximum(linear(h, "w5", "b5"), 0.0)
    # Lane-dense store: (N, 128); only lane 0 is real output, rest exactly 0.
    o_ref[...] = linear(h, "w6", "b6")


def init_params(key):
    """Unpadded f32 params mimicking PyTorch nn.Linear / nn.BatchNorm1d defaults."""
    params = []
    keys = jax.random.split(key, 2 * (len(DIMS) - 1))
    for i in range(len(DIMS) - 1):
        fan_in, fan_out = DIMS[i], DIMS[i + 1]
        bound = 1.0 / jnp.sqrt(float(fan_in))
        w = jax.random.uniform(keys[2 * i], (fan_in, fan_out), jnp.float32,
                               minval=-bound, maxval=bound)
        b = jax.random.uniform(keys[2 * i + 1], (fan_out,), jnp.float32,
                               minval=-bound, maxval=bound)
        params.append((w, b))
    bn1 = (jnp.ones((400,), jnp.float32), jnp.zeros((400,), jnp.float32))
    bn2 = (jnp.ones((50,), jnp.float32), jnp.zeros((50,), jnp.float32))
    return params, bn1, bn2


def pack_params(params, bn1, bn2):
    """Pack w2..w6 (zero-padded, MATMUL_DTYPE) into one lane-aligned slab and all
    small per-feature vectors + first-layer weight rows into one f32 slab."""
    w_slab = jnp.zeros((W_SLAB_ROWS, W_SLAB_COLS), MATMUL_DTYPE)
    for i, name in enumerate(("w2", "w3", "w4", "w5", "w6")):
        w = params[i + 1][0]
        off, _, _ = _W_OFF[name]
        w_slab = w_slab.at[:w.shape[0], off:off + w.shape[1]].set(
            w.astype(MATMUL_DTYPE))

    def padded(v, width):
        return jnp.zeros((width,), jnp.float32).at[:v.shape[0]].set(v)

    w1 = params[0][0]                        # (3, 400) f32
    segvals = {
        "b1": padded(params[0][1], PAD[1]),
        "b2": padded(params[1][1], PAD[2]),
        "b3": padded(params[2][1], PAD[3]),
        "b4": padded(params[3][1], PAD[4]),
        "b5": padded(params[4][1], PAD[5]),
        "b6": padded(params[5][1], PAD[6]),
        "g1": padded(bn1[0], PAD[1]), "be1": padded(bn1[1], PAD[1]),
        "g2": padded(bn2[0], PAD[4]), "be2": padded(bn2[1], PAD[4]),
        "w1r0": padded(w1[0], PAD[1]),
        "w1r1": padded(w1[1], PAD[1]),
        "w1r2": padded(w1[2], PAD[1]),
    }
    vec = jnp.concatenate([segvals[name] for name, _ in _VEC_SEGS])
    return w_slab, vec.reshape(1, VEC_LEN)


def mlp_forward(x, w_slab, vec):
    n = x.shape[0]
    vmem = pl.BlockSpec(memory_space=pltpu.MemorySpace.VMEM)
    out = pl.pallas_call(
        mlp_kernel,
        out_shape=jax.ShapeDtypeStruct((n, PAD[6]), jnp.float32),  # lane-dense
        in_specs=[vmem, vmem, vmem],
        out_specs=vmem,
    )(x, w_slab, vec)
    return out[:, :DIMS[6]]                  # (n, 1)


def mlp_reference(x, params, bn1, bn2):
    """Pure-JAX reference computing the same math (first layer f32 on the VPU
    path, remaining matmuls with MATMUL_DTYPE operands + f32 accumulation)."""
    def lin(h, w, b):
        return jnp.dot(h.astype(MATMUL_DTYPE), w.astype(MATMUL_DTYPE),
                       preferred_element_type=jnp.float32) + b

    def bn(h, g, be):
        mean = jnp.mean(h, axis=0, keepdims=True)
        var = jnp.mean((h - mean) ** 2, axis=0, keepdims=True)
        return (h - mean) * jax.lax.rsqrt(var + EPS) * g + be

    (w1, b1), (w2, b2), (w3, b3), (w4, b4), (w5, b5), (w6, b6) = params
    h = jnp.maximum(jnp.dot(x, w1) + b1, 0.0)        # f32, matches kernel layer 1
    h = bn(h, *bn1)
    h = jnp.maximum(lin(h, w2, b2), 0.0)
    h = jnp.maximum(lin(h, w3, b3), 0.0)
    h = jnp.maximum(lin(h, w4, b4), 0.0)
    h = bn(h, *bn2)
    h = jnp.maximum(lin(h, w5, b5), 0.0)
    return lin(h, w6, b6)


if __name__ == "__main__":
    key = jax.random.PRNGKey(0)
    k_params, k_x = jax.random.split(key)
    params, bn1, bn2 = init_params(k_params)
    w_slab, vec = pack_params(params, bn1, bn2)

    N = 8  # small batch; BatchNorm needs the whole batch in one block
    x = jax.random.normal(k_x, (N, DIMS[0]), jnp.float32)

    out = jax.block_until_ready(mlp_forward(x, w_slab, vec))
    ref = mlp_reference(x, params, bn1, bn2)

    assert out.shape == (N, 1)
    assert jnp.allclose(out, ref, atol=2e-3, rtol=2e-3), "mismatch vs JAX reference"

    print("KERNEL_OK")
</pallas_src>

<mosaic_0001>
module attributes {stable_mosaic.version = 11 : i64} {
  func.func @mlp_kernel(%arg0: memref<8x3xf32, #tpu.memory_space<vmem>>, %arg1: memref<512x768xbf16, #tpu.memory_space<vmem>>, %arg2: memref<1x4096xf32, #tpu.memory_space<vmem>>, %arg3: memref<8x128xf32, #tpu.memory_space<vmem>>) attributes {dimension_semantics = [], scalar_prefetch = 0 : i64, scratch_operands = 0 : i64, tpu.core_type = #tpu.core_type<tc>} {
    %c0 = arith.constant 0 : index
    %c0_0 = arith.constant 0 : index
    %0 = vector.load %arg0[%c0, %c0_0] : memref<8x3xf32, #tpu.memory_space<vmem>>, vector<8x3xf32>
    %1 = vector.extract_strided_slice %0 {offsets = [0, 0], sizes = [8, 1], strides = [1, 1]} : vector<8x3xf32> to vector<8x1xf32>
    %c0_1 = arith.constant 0 : index
    %c2560 = arith.constant 2560 : index
    %2 = vector.load %arg2[%c0_1, %c2560] : memref<1x4096xf32, #tpu.memory_space<vmem>>, vector<1x512xf32>
    %3 = vector.broadcast %1 : vector<8x1xf32> to vector<8x512xf32>
    %4 = vector.broadcast %2 : vector<1x512xf32> to vector<8x512xf32>
    %5 = arith.mulf %3, %4 : vector<8x512xf32>
    %6 = vector.extract_strided_slice %0 {offsets = [0, 1], sizes = [8, 1], strides = [1, 1]} : vector<8x3xf32> to vector<8x1xf32>
    %c0_2 = arith.constant 0 : index
    %c3072 = arith.constant 3072 : index
    %7 = vector.load %arg2[%c0_2, %c3072] : memref<1x4096xf32, #tpu.memory_space<vmem>>, vector<1x512xf32>
    %8 = vector.broadcast %6 : vector<8x1xf32> to vector<8x512xf32>
    %9 = vector.broadcast %7 : vector<1x512xf32> to vector<8x512xf32>
    %10 = arith.mulf %8, %9 : vector<8x512xf32>
    %11 = arith.addf %5, %10 : vector<8x512xf32>
    %12 = vector.extract_strided_slice %0 {offsets = [0, 2], sizes = [8, 1], strides = [1, 1]} : vector<8x3xf32> to vector<8x1xf32>
    %c0_3 = arith.constant 0 : index
    %c3584 = arith.constant 3584 : index
    %13 = vector.load %arg2[%c0_3, %c3584] : memref<1x4096xf32, #tpu.memory_space<vmem>>, vector<1x512xf32>
    %14 = vector.broadcast %12 : vector<8x1xf32> to vector<8x512xf32>
    %15 = vector.broadcast %13 : vector<1x512xf32> to vector<8x512xf32>
    %16 = arith.mulf %14, %15 : vector<8x512xf32>
    %17 = arith.addf %11, %16 : vector<8x512xf32>
    %c0_4 = arith.constant 0 : index
    %c0_5 = arith.constant 0 : index
    %18 = vector.load %arg2[%c0_4, %c0_5] : memref<1x4096xf32, #tpu.memory_space<vmem>>, vector<1x512xf32>
    %19 = vector.broadcast %18 : vector<1x512xf32> to vector<8x512xf32>
    %20 = arith.addf %17, %19 : vector<8x512xf32>
    %cst = arith.constant 0.000000e+00 : f32
    %21 = vector.broadcast %cst : f32 to vector<8x512xf32>
    %22 = arith.maximumf %20, %21 : vector<8x512xf32>
    %cst_6 = arith.constant dense<0.000000e+00> : vector<512xf32>
    %23 = vector.multi_reduction <add>, %22, %cst_6 [0] : vector<8x512xf32> to vector<512xf32>
    %24 = vector.shape_cast %23 : vector<512xf32> to vector<1x512xf32>
    %25 = arith.mulf %22, %22 : vector<8x512xf32>
    %cst_7 = arith.constant dense<0.000000e+00> : vector<512xf32>
    %26 = vector.multi_reduction <add>, %25, %cst_7 [0] : vector<8x512xf32> to vector<512xf32>
    %27 = vector.shape_cast %26 : vector<512xf32> to vector<1x512xf32>
    %cst_8 = arith.constant 1.250000e-01 : f32
    %28 = vector.broadcast %cst_8 : f32 to vector<1x512xf32>
    %29 = arith.mulf %24, %28 : vector<1x512xf32>
    %cst_9 = arith.constant 1.250000e-01 : f32
    %30 = vector.broadcast %cst_9 : f32 to vector<1x512xf32>
    %31 = arith.mulf %27, %30 : vector<1x512xf32>
    %32 = arith.mulf %29, %29 : vector<1x512xf32>
    %33 = arith.subf %31, %32 : vector<1x512xf32>
    %cst_10 = arith.constant 0.000000e+00 : f32
    %34 = vector.broadcast %cst_10 : f32 to vector<1x512xf32>
    %35 = arith.maximumf %33, %34 : vector<1x512xf32>
    %cst_11 = arith.constant 9.99999974E-6 : f32
    %36 = vector.broadcast %cst_11 : f32 to vector<1x512xf32>
    %37 = arith.addf %35, %36 : vector<1x512xf32>
    %38 = math.rsqrt %37 : vector<1x512xf32>
    %c0_12 = arith.constant 0 : index
    %c1280 = arith.constant 1280 : index
    %39 = vector.load %arg2[%c0_12, %c1280] : memref<1x4096xf32, #tpu.memory_space<vmem>>, vector<1x512xf32>
    %40 = arith.mulf %38, %39 : vector<1x512xf32>
    %c0_13 = arith.constant 0 : index
    %c1792 = arith.constant 1792 : index
    %41 = vector.load %arg2[%c0_13, %c1792] : memref<1x4096xf32, #tpu.memory_space<vmem>>, vector<1x512xf32>
    %42 = arith.mulf %29, %40 : vector<1x512xf32>
    %43 = arith.subf %41, %42 : vector<1x512xf32>
    %44 = vector.broadcast %40 : vector<1x512xf32> to vector<8x512xf32>
    %45 = arith.mulf %22, %44 : vector<8x512xf32>
    %46 = vector.broadcast %43 : vector<1x512xf32> to vector<8x512xf32>
    %47 = arith.addf %45, %46 : vector<8x512xf32>
    %48 = arith.truncf %47 : vector<8x512xf32> to vector<8x512xbf16>
    %c0_14 = arith.constant 0 : index
    %c0_15 = arith.constant 0 : index
    %49 = vector.load %arg1[%c0_14, %c0_15] : memref<512x768xbf16, #tpu.memory_space<vmem>>, vector<512x256xbf16>
    %cst_16 = arith.constant dense<0.000000e+00> : vector<8x256xf32>
    %50 = tpu.matmul %48, %49, %cst_16 {dimension_numbers = #tpu.dot_dimension_numbers<[1], [0], [0], [1], [0, 0, 1, 1], [], []>} : vector<8x512xbf16>, vector<512x256xbf16>, vector<8x256xf32> -> vector<8x256xf32>
    %c0_17 = arith.constant 0 : index
    %c512 = arith.constant 512 : index
    %51 = vector.load %arg2[%c0_17, %c512] : memref<1x4096xf32, #tpu.memory_space<vmem>>, vector<1x256xf32>
    %52 = vector.broadcast %51 : vector<1x256xf32> to vector<8x256xf32>
    %53 = arith.addf %50, %52 : vector<8x256xf32>
    %cst_18 = arith.constant 0.000000e+00 : f32
    %54 = vector.broadcast %cst_18 : f32 to vector<8x256xf32>
    %55 = arith.maximumf %53, %54 : vector<8x256xf32>
    %56 = arith.truncf %55 : vector<8x256xf32> to vector<8x256xbf16>
    %c0_19 = arith.constant 0 : index
    %c256 = arith.constant 256 : index
    %57 = vector.load %arg1[%c0_19, %c256] : memref<512x768xbf16, #tpu.memory_space<vmem>>, vector<256x128xbf16>
    %cst_20 = arith.constant dense<0.000000e+00> : vector<8x128xf32>
    %58 = tpu.matmul %56, %57, %cst_20 {dimension_numbers = #tpu.dot_dimension_numbers<[1], [0], [0], [1], [0, 0, 1, 1], [], []>} : vector<8x256xbf16>, vector<256x128xbf16>, vector<8x128xf32> -> vector<8x128xf32>
    %c0_21 = arith.constant 0 : index
    %c768 = arith.constant 768 : index
    %59 = vector.load %arg2[%c0_21, %c768] : memref<1x4096xf32, #tpu.memory_space<vmem>>, vector<1x128xf32>
    %60 = vector.broadcast %59 : vector<1x128xf32> to vector<8x128xf32>
    %61 = arith.addf %58, %60 : vector<8x128xf32>
    %cst_22 = arith.constant 0.000000e+00 : f32
    %62 = vector.broadcast %cst_22 : f32 to vector<8x128xf32>
    %63 = arith.maximumf %61, %62 : vector<8x128xf32>
    %64 = arith.truncf %63 : vector<8x128xf32> to vector<8x128xbf16>
    %c0_23 = arith.constant 0 : index
    %c384 = arith.constant 384 : index
    %65 = vector.load %arg1[%c0_23, %c384] : memref<512x768xbf16, #tpu.memory_space<vmem>>, vector<128x128xbf16>
    %cst_24 = arith.constant dense<0.000000e+00> : vector<8x128xf32>
    %66 = tpu.matmul %64, %65, %cst_24 {dimension_numbers = #tpu.dot_dimension_numbers<[1], [0], [0], [1], [0, 0, 1, 1], [], []>} : vector<8x128xbf16>, vector<128x128xbf16>, vector<8x128xf32> -> vector<8x128xf32>
    %c0_25 = arith.constant 0 : index
    %c896 = arith.constant 896 : index
    %67 = vector.load %arg2[%c0_25, %c896] : memref<1x4096xf32, #tpu.memory_space<vmem>>, vector<1x128xf32>
    %68 = vector.broadcast %67 : vector<1x128xf32> to vector<8x128xf32>
    %69 = arith.addf %66, %68 : vector<8x128xf32>
    %cst_26 = arith.constant 0.000000e+00 : f32
    %70 = vector.broadcast %cst_26 : f32 to vector<8x128xf32>
    %71 = arith.maximumf %69, %70 : vector<8x128xf32>
    %cst_27 = arith.constant dense<0.000000e+00> : vector<128xf32>
    %72 = vector.multi_reduction <add>, %71, %cst_27 [0] : vector<8x128xf32> to vector<128xf32>
    %73 = vector.shape_cast %72 : vector<128xf32> to vector<1x128xf32>
    %74 = arith.mulf %71, %71 : vector<8x128xf32>
    %cst_28 = arith.constant dense<0.000000e+00> : vector<128xf32>
    %75 = vector.multi_reduction <add>, %74, %cst_28 [0] : vector<8x128xf32> to vector<128xf32>
    %76 = vector.shape_cast %75 : vector<128xf32> to vector<1x128xf32>
    %cst_29 = arith.constant 1.250000e-01 : f32
    %77 = vector.broadcast %cst_29 : f32 to vector<1x128xf32>
    %78 = arith.mulf %73, %77 : vector<1x128xf32>
    %cst_30 = arith.constant 1.250000e-01 : f32
    %79 = vector.broadcast %cst_30 : f32 to vector<1x128xf32>
    %80 = arith.mulf %76, %79 : vector<1x128xf32>
    %81 = arith.mulf %78, %78 : vector<1x128xf32>
    %82 = arith.subf %80, %81 : vector<1x128xf32>
    %cst_31 = arith.constant 0.000000e+00 : f32
    %83 = vector.broadcast %cst_31 : f32 to vector<1x128xf32>
    %84 = arith.maximumf %82, %83 : vector<1x128xf32>
    %cst_32 = arith.constant 9.99999974E-6 : f32
    %85 = vector.broadcast %cst_32 : f32 to vector<1x128xf32>
    %86 = arith.addf %84, %85 : vector<1x128xf32>
    %87 = math.rsqrt %86 : vector<1x128xf32>
    %c0_33 = arith.constant 0 : index
    %c2304 = arith.constant 2304 : index
    %88 = vector.load %arg2[%c0_33, %c2304] : memref<1x4096xf32, #tpu.memory_space<vmem>>, vector<1x128xf32>
    %89 = arith.mulf %87, %88 : vector<1x128xf32>
    %c0_34 = arith.constant 0 : index
    %c2432 = arith.constant 2432 : index
    %90 = vector.load %arg2[%c0_34, %c2432] : memref<1x4096xf32, #tpu.memory_space<vmem>>, vector<1x128xf32>
    %91 = arith.mulf %78, %89 : vector<1x128xf32>
    %92 = arith.subf %90, %91 : vector<1x128xf32>
    %93 = vector.broadcast %89 : vector<1x128xf32> to vector<8x128xf32>
    %94 = arith.mulf %71, %93 : vector<8x128xf32>
    %95 = vector.broadcast %92 : vector<1x128xf32> to vector<8x128xf32>
    %96 = arith.addf %94, %95 : vector<8x128xf32>
    %97 = arith.truncf %96 : vector<8x128xf32> to vector<8x128xbf16>
    %c0_35 = arith.constant 0 : index
    %c512_36 = arith.constant 512 : index
    %98 = vector.load %arg1[%c0_35, %c512_36] : memref<512x768xbf16, #tpu.memory_space<vmem>>, vector<128x128xbf16>
    %cst_37 = arith.constant dense<0.000000e+00> : vector<8x128xf32>
    %99 = tpu.matmul %97, %98, %cst_37 {dimension_numbers = #tpu.dot_dimension_numbers<[1], [0], [0], [1], [0, 0, 1, 1], [], []>} : vector<8x128xbf16>, vector<128x128xbf16>, vector<8x128xf32> -> vector<8x128xf32>
    %c0_38 = arith.constant 0 : index
    %c1024 = arith.constant 1024 : index
    %100 = vector.load %arg2[%c0_38, %c1024] : memref<1x4096xf32, #tpu.memory_space<vmem>>, vector<1x128xf32>
    %101 = vector.broadcast %100 : vector<1x128xf32> to vector<8x128xf32>
    %102 = arith.addf %99, %101 : vector<8x128xf32>
    %cst_39 = arith.constant 0.000000e+00 : f32
    %103 = vector.broadcast %cst_39 : f32 to vector<8x128xf32>
    %104 = arith.maximumf %102, %103 : vector<8x128xf32>
    %105 = arith.truncf %104 : vector<8x128xf32> to vector<8x128xbf16>
    %c0_40 = arith.constant 0 : index
    %c640 = arith.constant 640 : index
    %106 = vector.load %arg1[%c0_40, %c640] : memref<512x768xbf16, #tpu.memory_space<vmem>>, vector<128x128xbf16>
    %cst_41 = arith.constant dense<0.000000e+00> : vector<8x128xf32>
    %107 = tpu.matmul %105, %106, %cst_41 {dimension_numbers = #tpu.dot_dimension_numbers<[1], [0], [0], [1], [0, 0, 1, 1], [], []>} : vector<8x128xbf16>, vector<128x128xbf16>, vector<8x128xf32> -> vector<8x128xf32>
    %c0_42 = arith.constant 0 : index
    %c1152 = arith.constant 1152 : index
    %108 = vector.load %arg2[%c0_42, %c1152] : memref<1x4096xf32, #tpu.memory_space<vmem>>, vector<1x128xf32>
    %109 = vector.broadcast %108 : vector<1x128xf32> to vector<8x128xf32>
    %110 = arith.addf %107, %109 : vector<8x128xf32>
    %c0_43 = arith.constant 0 : index
    %c0_44 = arith.constant 0 : index
    %111 = vector.load %arg3[%c0_43, %c0_44] : memref<8x128xf32, #tpu.memory_space<vmem>>, vector<8x128xf32>
    tpu.vector_store %arg3[%c0_43, %c0_44], %110 {strides = array<i32>} : memref<8x128xf32, #tpu.memory_space<vmem>>, vector<8x128xf32>,
    return
  }
}

</mosaic_0001>

<llo_original>
// kernel: tpu_custom_call.1
$region0: #{tpu_custom_call.1}
  #allocation0 [shape = 'u32[]', space=smem, size = 0x4, offset = 0x4, fixed_abs, tag = 'smem constant byte address 0x4 - core index']
  #allocation1 [shape = 'u32[144,128]{1,0:T(1,128)}', space=vmem, size = 0x12000, scoped, tag = 'internal scratch']
  %s0 = inlined_call_operand.vmem [shape: f32[8,3], index: 0, kind: input, shape index: {}]
  %s1 = inlined_call_operand.hbm [shape: bf16[512,768], index: 1, kind: input, shape index: {}]
  %s2 = inlined_call_operand.hbm [shape: f32[1,4096], index: 2, kind: input, shape index: {}]
  %s3 = inlined_call_operand.hbm [shape: f32[8,128], index: 3, kind: output, shape index: {}]
  %s4 = sld [smem:[#allocation0]]
  $region30: #{tpu_custom_call.1} parent=0
    _
  %s6 = ssub.s32 1, %s4
  %s7 = scalar_select 0, %s6, %s4
  $region1: #{tpu_custom_call.1} parent=0
    #allocation2 [shape = 'u8[786432]{0}', space=vmem, size = 0xc0000, scoped, tag = 'input window, operand 1, single buffered']
    #allocation3 [shape = 's32[1]{0}', space=sflag, size = 0x4, scoped, tag = 'scoped memory for tpu_custom_call.1']
    #allocation4 [shape = 's32[1]{0}', space=sflag, size = 0x4, scoped, tag = 'scoped memory for tpu_custom_call.1']
    #allocation5 [shape = 'u8[16384]{0}', space=vmem, size = 0x4000, scoped, tag = 'input window, operand 2, single buffered']
    #allocation6 [shape = 's32[1]{0}', space=sflag, size = 0x4, scoped, tag = 'scoped memory for tpu_custom_call.1']
    #allocation7 [shape = 'u8[4096]{0}', space=vmem, size = 0x1000, scoped, tag = 'output window, operand 0, single buffered']
    %8 = vsyncpa [#allocation3], 0
    %9 = vsyncpa [#allocation6], 0
    %10 = vsyncpa [#allocation4], 0
    // Predicated region
    $region2: #{tpu_custom_call.1} parent=1 // pred_check
      _
    $region3: #{tpu_custom_call.1} parent=1 // pred_check_branch
      %12 = sbr.rel (0) target = $region5
    $region4: #{tpu_custom_call.1} parent=1 // pred_region
      _
    $region5: #{tpu_custom_call.1} parent=1 // pred_fallthru
      _
    // Predicated region
    $region6: #{tpu_custom_call.1} parent=1 // pred_check
      _
    $region7: #{tpu_custom_call.1} parent=1 // pred_check_branch
      %14 = sbr.rel (0) target = $region9
    $region8: #{tpu_custom_call.1} parent=1 // pred_region
      %s16 = ssub.s32 24576, 24576
      %17 = vsyncadd [#allocation3], %s16
      %s18 = sshll.u32 [#allocation2], 4
      %s19 = int_to_ptr.vmem [resolvable:$true] %s18
      %24 = dma.hbm_to_vmem [thread:$0]  %s1, 24576, %s19, [#allocation3], 384, 384, 24
    $region9: #{tpu_custom_call.1} parent=1 // pred_fallthru
      _
    // Predicated region
    $region10: #{tpu_custom_call.1} parent=1 // pred_check
      _
    $region11: #{tpu_custom_call.1} parent=1 // pred_check_branch
      %26 = sbr.rel (0) target = $region13
    $region12: #{tpu_custom_call.1} parent=1 // pred_region
      %s28 = ssub.s32 512, 512
      %29 = vsyncadd [#allocation6], %s28
      %s31 = sshll.u32 [#allocation5], 4
      %s32 = int_to_ptr.vmem [resolvable:$true] %s31
      %34 = dma.hbm_to_vmem [thread:$0]  %s2, 512, %s32, [#allocation6]
    $region13: #{tpu_custom_call.1} parent=1 // pred_fallthru
      _
    // Predicated region
    $region14: #{tpu_custom_call.1} parent=1 // pred_check
      _
    $region15: #{tpu_custom_call.1} parent=1 // pred_check_branch
      %36 = sbr.rel (0) target = $region17
    $region16: #{tpu_custom_call.1} parent=1 // pred_region
      %37 = dma.done [#allocation3], 24576
    $region17: #{tpu_custom_call.1} parent=1 // pred_fallthru
      _
    // Predicated region
    $region18: #{tpu_custom_call.1} parent=1 // pred_check
      _
    $region19: #{tpu_custom_call.1} parent=1 // pred_check_branch
      %39 = sbr.rel (0) target = $region21
    $region20: #{tpu_custom_call.1} parent=1 // pred_region
      %40 = dma.done [#allocation6], 512
    $region21: #{tpu_custom_call.1} parent=1 // pred_fallthru
      _
    %v42 = vld [vmem:[%s0] sm:$0xff]
    %v43 = vld [vmem:[#allocation5 + $0x14] sm:$0xf]
    %45 = vset.pattern.permute.xlu0 0
    %46 = vperm.xlu0 %45, %v42
    %v47 = vpop.permute.xlu0 %46
    %v50 = vlaneseq
    %v51 = vshrl.u32 %v50, 7
    %v52 = vsub.s32 0, %v51
    %v53 = vrot.slane %v43, %v52
    %v54 = vlaneseq
    %v55 = vshrl.u32 %v54, 7
    %v56 = vsub.s32 1, %v55
    %v57 = vrot.slane %v43, %v56
    %v58 = vlaneseq
    %v59 = vshrl.u32 %v58, 7
    %v60 = vsub.s32 2, %v59
    %v61 = vrot.slane %v43, %v60
    %v62 = vlaneseq
    %v63 = vshrl.u32 %v62, 7
    %v64 = vsub.s32 3, %v63
    %v65 = vrot.slane %v43, %v64
    %v70 = vmul.f32 %v47, %v53
    %v71 = vmul.f32 %v47, %v57
    %v72 = vmul.f32 %v47, %v61
    %v73 = vmul.f32 %v47, %v65
    %v74 = vld [vmem:[#allocation5 + $0x18] sm:$0xf]
    %75 = vset.pattern.permute.xlu0 1
    %76 = vperm.xlu0 %75, %v42
    %v77 = vpop.permute.xlu0 %76
    %v80 = vlaneseq
    %v81 = vshrl.u32 %v80, 7
    %v82 = vsub.s32 0, %v81
    %v83 = vrot.slane %v74, %v82
    %v84 = vlaneseq
    %v85 = vshrl.u32 %v84, 7
    %v86 = vsub.s32 1, %v85
    %v87 = vrot.slane %v74, %v86
    %v88 = vlaneseq
    %v89 = vshrl.u32 %v88, 7
    %v90 = vsub.s32 2, %v89
    %v91 = vrot.slane %v74, %v90
    %v92 = vlaneseq
    %v93 = vshrl.u32 %v92, 7
    %v94 = vsub.s32 3, %v93
    %v95 = vrot.slane %v74, %v94
    %v100 = vmul.f32 %v77, %v83
    %v101 = vmul.f32 %v77, %v87
    %v102 = vmul.f32 %v77, %v91
    %v103 = vmul.f32 %v77, %v95
    %v104 = vadd.f32 %v70, %v100
    %v105 = vadd.f32 %v71, %v101
    %v106 = vadd.f32 %v72, %v102
    %v107 = vadd.f32 %v73, %v103
    %v108 = vld [vmem:[#allocation5 + $0x1c] sm:$0xf]
    %109 = vset.pattern.permute.xlu0 2
    %110 = vperm.xlu0 %109, %v42
    %v111 = vpop.permute.xlu0 %110
    %v114 = vlaneseq
    %v115 = vshrl.u32 %v114, 7
    %v116 = vsub.s32 0, %v115
    %v117 = vrot.slane %v108, %v116
    %v118 = vlaneseq
    %v119 = vshrl.u32 %v118, 7
    %v120 = vsub.s32 1, %v119
    %v121 = vrot.slane %v108, %v120
    %v122 = vlaneseq
    %v123 = vshrl.u32 %v122, 7
    %v124 = vsub.s32 2, %v123
    %v125 = vrot.slane %v108, %v124
    %v126 = vlaneseq
    %v127 = vshrl.u32 %v126, 7
    %v128 = vsub.s32 3, %v127
    %v129 = vrot.slane %v108, %v128
    %v134 = vmul.f32 %v111, %v117
    %v135 = vmul.f32 %v111, %v121
    %v136 = vmul.f32 %v111, %v125
    %v137 = vmul.f32 %v111, %v129
    %v138 = vadd.f32 %v104, %v134
    %v139 = vadd.f32 %v105, %v135
    %v140 = vadd.f32 %v106, %v136
    %v141 = vadd.f32 %v107, %v137
    %v142 = vld [vmem:[#allocation5] sm:$0xf]
    %v144 = vlaneseq
    %v145 = vshrl.u32 %v144, 7
    %v146 = vsub.s32 0, %v145
    %v147 = vrot.slane %v142, %v146
    %v148 = vlaneseq
    %v149 = vshrl.u32 %v148, 7
    %v150 = vsub.s32 1, %v149
    %v151 = vrot.slane %v142, %v150
    %v152 = vlaneseq
    %v153 = vshrl.u32 %v152, 7
    %v154 = vsub.s32 2, %v153
    %v155 = vrot.slane %v142, %v154
    %v156 = vlaneseq
    %v157 = vshrl.u32 %v156, 7
    %v158 = vsub.s32 3, %v157
    %v159 = vrot.slane %v142, %v158
    %v164 = vadd.f32 %v138, %v147
    %v165 = vadd.f32 %v139, %v151
    %v166 = vadd.f32 %v140, %v155
    %v167 = vadd.f32 %v141, %v159
    %v168 = vmax.f32 %v164, 0.0
    %v169 = vmax.f32 %v165, 0.0
    %v170 = vmax.f32 %v166, 0.0
    %v171 = vmax.f32 %v167, 0.0
    %v172 = vrot.slane %v168, 4
    %v173 = vadd.f32 %v168, %v172
    %v174 = vrot.slane %v173, 2
    %v175 = vadd.f32 %v173, %v174
    %v176 = vrot.slane %v175, 1
    %v177 = vadd.f32 %v175, %v176
    %v178 = vrot.slane %v169, 4
    %v179 = vadd.f32 %v169, %v178
    %v180 = vrot.slane %v179, 2
    %v181 = vadd.f32 %v179, %v180
    %v182 = vrot.slane %v181, 1
    %v183 = vadd.f32 %v181, %v182
    %v184 = vrot.slane %v170, 4
    %v185 = vadd.f32 %v170, %v184
    %v186 = vrot.slane %v185, 2
    %v187 = vadd.f32 %v185, %v186
    %v188 = vrot.slane %v187, 1
    %v189 = vadd.f32 %v187, %v188
    %v190 = vrot.slane %v171, 4
    %v191 = vadd.f32 %v171, %v190
    %v192 = vrot.slane %v191, 2
    %v193 = vadd.f32 %v191, %v192
    %v194 = vrot.slane %v193, 1
    %v195 = vadd.f32 %v193, %v194
    %v196 = vmul.f32 %v168, %v168
    %v197 = vmul.f32 %v169, %v169
    %v198 = vmul.f32 %v170, %v170
    %v199 = vmul.f32 %v171, %v171
    %v200 = vrot.slane %v196, 4
    %v201 = vadd.f32 %v196, %v200
    %v202 = vrot.slane %v201, 2
    %v203 = vadd.f32 %v201, %v202
    %v204 = vrot.slane %v203, 1
    %v205 = vadd.f32 %v203, %v204
    %v206 = vrot.slane %v197, 4
    %v207 = vadd.f32 %v197, %v206
    %v208 = vrot.slane %v207, 2
    %v209 = vadd.f32 %v207, %v208
    %v210 = vrot.slane %v209, 1
    %v211 = vadd.f32 %v209, %v210
    %v212 = vrot.slane %v198, 4
    %v213 = vadd.f32 %v198, %v212
    %v214 = vrot.slane %v213, 2
    %v215 = vadd.f32 %v213, %v214
    %v216 = vrot.slane %v215, 1
    %v217 = vadd.f32 %v215, %v216
    %v218 = vrot.slane %v199, 4
    %v219 = vadd.f32 %v199, %v218
    %v220 = vrot.slane %v219, 2
    %v221 = vadd.f32 %v219, %v220
    %v222 = vrot.slane %v221, 1
    %v223 = vadd.f32 %v221, %v222
    %v224 = vmul.f32 %v177, 0.125
    %v225 = vmul.f32 %v183, 0.125
    %v226 = vmul.f32 %v189, 0.125
    %v227 = vmul.f32 %v195, 0.125
    %v228 = vmul.f32 %v205, 0.125
    %v229 = vmul.f32 %v211, 0.125
    %v230 = vmul.f32 %v217, 0.125
    %v231 = vmul.f32 %v223, 0.125
    %v232 = vmul.f32 %v224, %v224
    %v233 = vmul.f32 %v225, %v225
    %v234 = vmul.f32 %v226, %v226
    %v235 = vmul.f32 %v227, %v227
    %v236 = vsub.f32 %v228, %v232
    %v237 = vsub.f32 %v229, %v233
    %v238 = vsub.f32 %v230, %v234
    %v239 = vsub.f32 %v231, %v235
    %v240 = vmax.f32 %v236, 0.0
    %v241 = vmax.f32 %v237, 0.0
    %v242 = vmax.f32 %v238, 0.0
    %v243 = vmax.f32 %v239, 0.0
    %v244 = vadd.f32 %v240, 1e-05
    %v245 = vadd.f32 %v241, 1e-05
    %v246 = vadd.f32 %v242, 1e-05
    %v247 = vadd.f32 %v243, 1e-05
    %v248 = vrsqrt.pop %v244
    %v249 = vrsqrt.pop %v245
    %v250 = vrsqrt.pop %v246
    %v251 = vrsqrt.pop %v247
    %v252 = vld [vmem:[#allocation5 + $0xa] sm:$0xf]
    %v254 = vlaneseq
    %v255 = vshrl.u32 %v254, 7
    %v256 = vsub.s32 0, %v255
    %v257 = vrot.slane %v252, %v256
    %v258 = vlaneseq
    %v259 = vshrl.u32 %v258, 7
    %v260 = vsub.s32 1, %v259
    %v261 = vrot.slane %v252, %v260
    %v262 = vlaneseq
    %v263 = vshrl.u32 %v262, 7
    %v264 = vsub.s32 2, %v263
    %v265 = vrot.slane %v252, %v264
    %v266 = vlaneseq
    %v267 = vshrl.u32 %v266, 7
    %v268 = vsub.s32 3, %v267
    %v269 = vrot.slane %v252, %v268
    %v274 = vmul.f32 %v248, %v257
    %v275 = vmul.f32 %v249, %v261
    %v276 = vmul.f32 %v250, %v265
    %v277 = vmul.f32 %v251, %v269
    %v278 = vld [vmem:[#allocation5 + $0xe] sm:$0xf]
    %v279 = vmul.f32 %v224, %v274
    %v280 = vmul.f32 %v225, %v275
    %v281 = vmul.f32 %v226, %v276
    %v282 = vmul.f32 %v227, %v277
    %v287 = vcombine.low %v279, %v280
    %v288 = vcombine.low %v281, %v282
    %v290 = vunpack.c.l.s4 1966171168
    %v291 = vunpack.c.0.s8 %v290
    %v292 = vlaneseq
    %v293 = vshrl.u32 %v292, 7
    %v294 = vsub.s32 %v291, %v293
    %v295 = vrot.slane %v287, %v294
    %v297 = vunpack.c.l.s4 1966171168
    %v298 = vunpack.c.0.s8 %v297
    %v299 = vlaneseq
    %v300 = vshrl.u32 %v299, 7
    %v301 = vsub.s32 %v298, %v300
    %v302 = vrot.slane %v288, %v301
    %v303 = vcombine.low %v295, %v302
    %v305 = vunpack.c.l.s4 1966171168
    %v306 = vunpack.c.0.s8 %v305
    %v307 = vlaneseq
    %v308 = vshrl.u32 %v307, 7
    %v309 = vsub.s32 %v306, %v308
    %v310 = vrot.slane %v303, %v309
    %v312 = vsub.f32 %v278, %v310
    %v313 = vlaneseq
    %v314 = vshrl.u32 %v313, 7
    %v315 = vsub.s32 0, %v314
    %v316 = vrot.slane %v274, %v315
    %v317 = vlaneseq
    %v318 = vshrl.u32 %v317, 7
    %v319 = vsub.s32 0, %v318
    %v320 = vrot.slane %v275, %v319
    %v321 = vlaneseq
    %v322 = vshrl.u32 %v321, 7
    %v323 = vsub.s32 0, %v322
    %v324 = vrot.slane %v276, %v323
    %v325 = vlaneseq
    %v326 = vshrl.u32 %v325, 7
    %v327 = vsub.s32 0, %v326
    %v328 = vrot.slane %v277, %v327
    %v329 = vmul.f32 %v168, %v316
    %v330 = vmul.f32 %v169, %v320
    %v331 = vmul.f32 %v170, %v324
    %v332 = vmul.f32 %v171, %v328
    %v334 = vlaneseq
    %v335 = vshrl.u32 %v334, 7
    %v336 = vsub.s32 0, %v335
    %v337 = vrot.slane %v312, %v336
    %v338 = vlaneseq
    %v339 = vshrl.u32 %v338, 7
    %v340 = vsub.s32 1, %v339
    %v341 = vrot.slane %v312, %v340
    %v342 = vlaneseq
    %v343 = vshrl.u32 %v342, 7
    %v344 = vsub.s32 2, %v343
    %v345 = vrot.slane %v312, %v344
    %v346 = vlaneseq
    %v347 = vshrl.u32 %v346, 7
    %v348 = vsub.s32 3, %v347
    %v349 = vrot.slane %v312, %v348
    %v354 = vadd.f32 %v329, %v337
    %v355 = vadd.f32 %v330, %v341
    %v356 = vadd.f32 %v331, %v345
    %v357 = vadd.f32 %v332, %v349
    %v358 = vpack.c.bf16 %v354, %v354
    %v359 = vpack.c.bf16 %v355, %v355
    %v360 = vpack.c.bf16 %v356, %v356
    %v361 = vpack.c.bf16 %v357, %v357
    %v362 = vld [vmem:[#allocation2] sm:$0xff]
    %v363 = vld [vmem:[#allocation2 + $0x18] sm:$0xff]
    %v364 = vld [vmem:[#allocation2 + $0x30] sm:$0xff]
    %v365 = vld [vmem:[#allocation2 + $0x48] sm:$0xff]
    %v366 = vld [vmem:[#allocation2 + $0x60] sm:$0xff]
    %v367 = vld [vmem:[#allocation2 + $0x78] sm:$0xff]
    %v368 = vld [vmem:[#allocation2 + $0x90] sm:$0xff]
    %v369 = vld [vmem:[#allocation2 + $0xa8] sm:$0xff]
    %v370 = vld [vmem:[#allocation2 + $0xc0] sm:$0xff]
    %v371 = vld [vmem:[#allocation2 + $0xd8] sm:$0xff]
    %v372 = vld [vmem:[#allocation2 + $0xf0] sm:$0xff]
    %v373 = vld [vmem:[#allocation2 + $0x108] sm:$0xff]
    %v374 = vld [vmem:[#allocation2 + $0x120] sm:$0xff]
    %v375 = vld [vmem:[#allocation2 + $0x138] sm:$0xff]
    %v376 = vld [vmem:[#allocation2 + $0x150] sm:$0xff]
    %v377 = vld [vmem:[#allocation2 + $0x168] sm:$0xff]
    %v378 = vld [vmem:[#allocation2 + $0x180] sm:$0xff]
    %v379 = vld [vmem:[#allocation2 + $0x198] sm:$0xff]
    %v380 = vld [vmem:[#allocation2 + $0x1b0] sm:$0xff]
    %v381 = vld [vmem:[#allocation2 + $0x1c8] sm:$0xff]
    %v382 = vld [vmem:[#allocation2 + $0x1e0] sm:$0xff]
    %v383 = vld [vmem:[#allocation2 + $0x1f8] sm:$0xff]
    %v384 = vld [vmem:[#allocation2 + $0x210] sm:$0xff]
    %v385 = vld [vmem:[#allocation2 + $0x228] sm:$0xff]
    %v386 = vld [vmem:[#allocation2 + $0x240] sm:$0xff]
    %v387 = vld [vmem:[#allocation2 + $0x258] sm:$0xff]
    %v388 = vld [vmem:[#allocation2 + $0x270] sm:$0xff]
    %v389 = vld [vmem:[#allocation2 + $0x288] sm:$0xff]
    %v390 = vld [vmem:[#allocation2 + $0x2a0] sm:$0xff]
    %v391 = vld [vmem:[#allocation2 + $0x2b8] sm:$0xff]
    %v392 = vld [vmem:[#allocation2 + $0x2d0] sm:$0xff]
    %v393 = vld [vmem:[#allocation2 + $0x2e8] sm:$0xff]
    %v394 = vld [vmem:[#allocation2 + $0x300] sm:$0xff]
    %v395 = vld [vmem:[#allocation2 + $0x318] sm:$0xff]
    %v396 = vld [vmem:[#allocation2 + $0x330] sm:$0xff]
    %v397 = vld [vmem:[#allocation2 + $0x348] sm:$0xff]
    %v398 = vld [vmem:[#allocation2 + $0x360] sm:$0xff]
    %v399 = vld [vmem:[#allocation2 + $0x378] sm:$0xff]
    %v400 = vld [vmem:[#allocation2 + $0x390] sm:$0xff]
    %v401 = vld [vmem:[#allocation2 + $0x3a8] sm:$0xff]
    %v402 = vld [vmem:[#allocation2 + $0x3c0] sm:$0xff]
    %v403 = vld [vmem:[#allocation2 + $0x3d8] sm:$0xff]
    %v404 = vld [vmem:[#allocation2 + $0x3f0] sm:$0xff]
    %v405 = vld [vmem:[#allocation2 + $0x408] sm:$0xff]
    %v406 = vld [vmem:[#allocation2 + $0x420] sm:$0xff]
    %v407 = vld [vmem:[#allocation2 + $0x438] sm:$0xff]
    %v408 = vld [vmem:[#allocation2 + $0x450] sm:$0xff]
    %v409 = vld [vmem:[#allocation2 + $0x468] sm:$0xff]
    %v410 = vld [vmem:[#allocation2 + $0x480] sm:$0xff]
    %v411 = vld [vmem:[#allocation2 + $0x498] sm:$0xff]
    %v412 = vld [vmem:[#allocation2 + $0x4b0] sm:$0xff]
    %v413 = vld [vmem:[#allocation2 + $0x4c8] sm:$0xff]
    %v414 = vld [vmem:[#allocation2 + $0x4e0] sm:$0xff]
    %v415 = vld [vmem:[#allocation2 + $0x4f8] sm:$0xff]
    %v416 = vld [vmem:[#allocation2 + $0x510] sm:$0xff]
    %v417 = vld [vmem:[#allocation2 + $0x528] sm:$0xff]
    %v418 = vld [vmem:[#allocation2 + $0x540] sm:$0xff]
    %v419 = vld [vmem:[#allocation2 + $0x558] sm:$0xff]
    %v420 = vld [vmem:[#allocation2 + $0x570] sm:$0xff]
    %v421 = vld [vmem:[#allocation2 + $0x588] sm:$0xff]
    %v422 = vld [vmem:[#allocation2 + $0x5a0] sm:$0xff]
    %v423 = vld [vmem:[#allocation2 + $0x5b8] sm:$0xff]
    %v424 = vld [vmem:[#allocation2 + $0x5d0] sm:$0xff]
    %v425 = vld [vmem:[#allocation2 + $0x5e8] sm:$0xff]
    %v426 = vld [vmem:[#allocation5 + $0x4] sm:$0x3]
    %v428 = vlaneseq
    %v429 = vshrl.u32 %v428, 7
    %v430 = vsub.s32 0, %v429
    %v431 = vrot.slane %v426, %v430
    %v432 = vlaneseq
    %v433 = vshrl.u32 %v432, 7
    %v434 = vsub.s32 1, %v433
    %v435 = vrot.slane %v426, %v434
    %v502 = vunpack.c.l.b16 %v362
    %v503 = vunpack.c.h.b16 %v362
    %v504 = vunpack.c.l.b16 %v363
    %v505 = vunpack.c.h.b16 %v363
    %v506 = vunpack.c.l.b16 %v364
    %v507 = vunpack.c.h.b16 %v364
    %v508 = vunpack.c.l.b16 %v365
    %v509 = vunpack.c.h.b16 %v365
    %v510 = vunpack.c.l.b16 %v366
    %v511 = vunpack.c.h.b16 %v366
    %v512 = vunpack.c.l.b16 %v367
    %v513 = vunpack.c.h.b16 %v367
    %v514 = vunpack.c.l.b16 %v368
    %v515 = vunpack.c.h.b16 %v368
    %v516 = vunpack.c.l.b16 %v369
    %v517 = vunpack.c.h.b16 %v369
    %v518 = vunpack.c.l.b16 %v370
    %v519 = vunpack.c.h.b16 %v370
    %v520 = vunpack.c.l.b16 %v371
    %v521 = vunpack.c.h.b16 %v371
    %v522 = vunpack.c.l.b16 %v372
    %v523 = vunpack.c.h.b16 %v372
    %v524 = vunpack.c.l.b16 %v373
    %v525 = vunpack.c.h.b16 %v373
    %v526 = vunpack.c.l.b16 %v374
    %v527 = vunpack.c.h.b16 %v374
    %v528 = vunpack.c.l.b16 %v375
    %v529 = vunpack.c.h.b16 %v375
    %v530 = vunpack.c.l.b16 %v376
    %v531 = vunpack.c.h.b16 %v376
    %v532 = vunpack.c.l.b16 %v377
    %v533 = vunpack.c.h.b16 %v377
    %v534 = vunpack.c.l.b16 %v378
    %v535 = vunpack.c.h.b16 %v378
    %v536 = vunpack.c.l.b16 %v379
    %v537 = vunpack.c.h.b16 %v379
    %v538 = vunpack.c.l.b16 %v380
    %v539 = vunpack.c.h.b16 %v380
    %v540 = vunpack.c.l.b16 %v381
    %v541 = vunpack.c.h.b16 %v381
    %v542 = vunpack.c.l.b16 %v382
    %v543 = vunpack.c.h.b16 %v382
    %v544 = vunpack.c.l.b16 %v383
    %v545 = vunpack.c.h.b16 %v383
    %v546 = vunpack.c.l.b16 %v384
    %v547 = vunpack.c.h.b16 %v384
    %v548 = vunpack.c.l.b16 %v385
    %v549 = vunpack.c.h.b16 %v385
    %v550 = vunpack.c.l.b16 %v386
    %v551 = vunpack.c.h.b16 %v386
    %v552 = vunpack.c.l.b16 %v387
    %v553 = vunpack.c.h.b16 %v387
    %v554 = vunpack.c.l.b16 %v388
    %v555 = vunpack.c.h.b16 %v388
    %v556 = vunpack.c.l.b16 %v389
    %v557 = vunpack.c.h.b16 %v389
    %v558 = vunpack.c.l.b16 %v390
    %v559 = vunpack.c.h.b16 %v390
    %v560 = vunpack.c.l.b16 %v391
    %v561 = vunpack.c.h.b16 %v391
    %v562 = vunpack.c.l.b16 %v392
    %v563 = vunpack.c.h.b16 %v392
    %v564 = vunpack.c.l.b16 %v393
    %v565 = vunpack.c.h.b16 %v393
    %v566 = vunpack.c.l.b16 %v394
    %v567 = vunpack.c.h.b16 %v394
    %v568 = vunpack.c.l.b16 %v395
    %v569 = vunpack.c.h.b16 %v395
    %v570 = vunpack.c.l.b16 %v396
    %v571 = vunpack.c.h.b16 %v396
    %v572 = vunpack.c.l.b16 %v397
    %v573 = vunpack.c.h.b16 %v397
    %v574 = vunpack.c.l.b16 %v398
    %v575 = vunpack.c.h.b16 %v398
    %v576 = vunpack.c.l.b16 %v399
    %v577 = vunpack.c.h.b16 %v399
    %v578 = vunpack.c.l.b16 %v400
    %v579 = vunpack.c.h.b16 %v400
    %v580 = vunpack.c.l.b16 %v401
    %v581 = vunpack.c.h.b16 %v401
    %v582 = vunpack.c.l.b16 %v402
    %v583 = vunpack.c.h.b16 %v402
    %v584 = vunpack.c.l.b16 %v403
    %v585 = vunpack.c.h.b16 %v403
    %v586 = vunpack.c.l.b16 %v404
    %v587 = vunpack.c.h.b16 %v404
    %v588 = vunpack.c.l.b16 %v405
    %v589 = vunpack.c.h.b16 %v405
    %v590 = vunpack.c.l.b16 %v406
    %v591 = vunpack.c.h.b16 %v406
    %v592 = vunpack.c.l.b16 %v407
    %v593 = vunpack.c.h.b16 %v407
    %v594 = vunpack.c.l.b16 %v408
    %v595 = vunpack.c.h.b16 %v408
    %v596 = vunpack.c.l.b16 %v409
    %v597 = vunpack.c.h.b16 %v409
    %v598 = vunpack.c.l.b16 %v410
    %v599 = vunpack.c.h.b16 %v410
    %v600 = vunpack.c.l.b16 %v411
    %v601 = vunpack.c.h.b16 %v411
    %v602 = vunpack.c.l.b16 %v412
    %v603 = vunpack.c.h.b16 %v412
    %v604 = vunpack.c.l.b16 %v413
    %v605 = vunpack.c.h.b16 %v413
    %v606 = vunpack.c.l.b16 %v414
    %v607 = vunpack.c.h.b16 %v414
    %v608 = vunpack.c.l.b16 %v415
    %v609 = vunpack.c.h.b16 %v415
    %v610 = vunpack.c.l.b16 %v416
    %v611 = vunpack.c.h.b16 %v416
    %v612 = vunpack.c.l.b16 %v417
    %v613 = vunpack.c.h.b16 %v417
    %v614 = vunpack.c.l.b16 %v418
    %v615 = vunpack.c.h.b16 %v418
    %v616 = vunpack.c.l.b16 %v419
    %v617 = vunpack.c.h.b16 %v419
    %v618 = vunpack.c.l.b16 %v420
    %v619 = vunpack.c.h.b16 %v420
    %v620 = vunpack.c.l.b16 %v421
    %v621 = vunpack.c.h.b16 %v421
    %v622 = vunpack.c.l.b16 %v422
    %v623 = vunpack.c.h.b16 %v422
    %v624 = vunpack.c.l.b16 %v423
    %v625 = vunpack.c.h.b16 %v423
    %v626 = vunpack.c.l.b16 %v424
    %v627 = vunpack.c.h.b16 %v424
    %v628 = vunpack.c.l.b16 %v425
    %v629 = vunpack.c.h.b16 %v425
    %v630 = vpack.c.b16 %v504, %v502
    %v631 = vpack.c.b16 %v505, %v503
    %v632 = vpack.c.b16 %v508, %v506
    %v633 = vpack.c.b16 %v509, %v507
    %v634 = vpack.c.b16 %v512, %v510
    %v635 = vpack.c.b16 %v513, %v511
    %v636 = vpack.c.b16 %v516, %v514
    %v637 = vpack.c.b16 %v517, %v515
    %v638 = vpack.c.b16 %v520, %v518
    %v639 = vpack.c.b16 %v521, %v519
    %v640 = vpack.c.b16 %v524, %v522
    %v641 = vpack.c.b16 %v525, %v523
    %v642 = vpack.c.b16 %v528, %v526
    %v643 = vpack.c.b16 %v529, %v527
    %v644 = vpack.c.b16 %v532, %v530
    %v645 = vpack.c.b16 %v533, %v531
    %v646 = vpack.c.b16 %v536, %v534
    %v647 = vpack.c.b16 %v537, %v535
    %v648 = vpack.c.b16 %v540, %v538
    %v649 = vpack.c.b16 %v541, %v539
    %v650 = vpack.c.b16 %v544, %v542
    %v651 = vpack.c.b16 %v545, %v543
    %v652 = vpack.c.b16 %v548, %v546
    %v653 = vpack.c.b16 %v549, %v547
    %v654 = vpack.c.b16 %v552, %v550
    %v655 = vpack.c.b16 %v553, %v551
    %v656 = vpack.c.b16 %v556, %v554
    %v657 = vpack.c.b16 %v557, %v555
    %v658 = vpack.c.b16 %v560, %v558
    %v659 = vpack.c.b16 %v561, %v559
    %v660 = vpack.c.b16 %v564, %v562
    %v661 = vpack.c.b16 %v565, %v563
    %v662 = vpack.c.b16 %v568, %v566
    %v663 = vpack.c.b16 %v569, %v567
    %v664 = vpack.c.b16 %v572, %v570
    %v665 = vpack.c.b16 %v573, %v571
    %v666 = vpack.c.b16 %v576, %v574
    %v667 = vpack.c.b16 %v577, %v575
    %v668 = vpack.c.b16 %v580, %v578
    %v669 = vpack.c.b16 %v581, %v579
    %v670 = vpack.c.b16 %v584, %v582
    %v671 = vpack.c.b16 %v585, %v583
    %v672 = vpack.c.b16 %v588, %v586
    %v673 = vpack.c.b16 %v589, %v587
    %v674 = vpack.c.b16 %v592, %v590
    %v675 = vpack.c.b16 %v593, %v591
    %v676 = vpack.c.b16 %v596, %v594
    %v677 = vpack.c.b16 %v597, %v595
    %v678 = vpack.c.b16 %v600, %v598
    %v679 = vpack.c.b16 %v601, %v599
    %v680 = vpack.c.b16 %v604, %v602
    %v681 = vpack.c.b16 %v605, %v603
    %v682 = vpack.c.b16 %v608, %v606
    %v683 = vpack.c.b16 %v609, %v607
    %v684 = vpack.c.b16 %v612, %v610
    %v685 = vpack.c.b16 %v613, %v611
    %v686 = vpack.c.b16 %v616, %v614
    %v687 = vpack.c.b16 %v617, %v615
    %v688 = vpack.c.b16 %v620, %v618
    %v689 = vpack.c.b16 %v621, %v619
    %v690 = vpack.c.b16 %v624, %v622
    %v691 = vpack.c.b16 %v625, %v623
    %v692 = vpack.c.b16 %v628, %v626
    %v693 = vpack.c.b16 %v629, %v627
    %758 = vmatprep.subr.bf16.mxu0 %v645
    %759 = vmatpush1.bf16.msra.mxu0 %v644
    %760 = vmatprep.subr.bf16.mxu0 %v643
    %761 = vmatpush1.bf16.msra.mxu0 %v642
    %762 = vmatprep.subr.bf16.mxu0 %v641
    %763 = vmatpush1.bf16.msra.mxu0 %v640
    %764 = vmatprep.subr.bf16.mxu0 %v639
    %765 = vmatpush1.bf16.msra.mxu0 %v638
    %766 = vmatprep.subr.bf16.mxu0 %v637
    %767 = vmatpush1.bf16.msra.mxu0 %v636
    %768 = vmatprep.subr.bf16.mxu0 %v635
    %769 = vmatpush1.bf16.msra.mxu0 %v634
    %770 = vmatprep.subr.bf16.mxu0 %v633
    %771 = vmatpush1.bf16.msra.mxu0 %v632
    %772 = vmatprep.subr.bf16.mxu0 %v631
    %773 = vmatpush1.bf16.msra.mxu0 %v630
    %774 = vmatprep.subr.bf16.mxu0 %v661
    %775 = vmatpush2.bf16.msra.mxu0 %v660
    %776 = vmatprep.subr.bf16.mxu0 %v659
    %777 = vmatpush2.bf16.msra.mxu0 %v658
    %778 = vmatprep.subr.bf16.mxu0 %v657
    %779 = vmatpush2.bf16.msra.mxu0 %v656
    %780 = vmatprep.subr.bf16.mxu0 %v655
    %781 = vmatpush2.bf16.msra.mxu0 %v654
    %782 = vmatprep.subr.bf16.mxu0 %v653
    %783 = vmatpush2.bf16.msra.mxu0 %v652
    %784 = vmatprep.subr.bf16.mxu0 %v651
    %785 = vmatpush2.bf16.msra.mxu0 %v650
    %786 = vmatprep.subr.bf16.mxu0 %v649
    %787 = vmatpush2.bf16.msra.mxu0 %v648
    %788 = vmatprep.subr.bf16.mxu0 %v647
    %789 = vmatpush2.bf16.msra.mxu0 %v646
    %790 = vmatprep.mubr.bf16.mxu0 %v359
    %791 = vmatmul.mubr.bf16.gmra.mxu0 %v358
    %v792 = vpop.f32.mrf.mxu0
    %v793 = vadd.f32 %v431, %v792
    %v794 = vpop.f32.mrf.mxu0
    %v795 = vadd.f32 %v435, %v794
    %v796 = vpop.f32.mrf.mxu0
    %v797 = vpop.f32.mrf.mxu0
    %798 = vdwg.mxu0
    %799 = vmatprep.subr.bf16.mxu0 %v677
    %800 = vmatpush1.bf16.msra.mxu0 %v676
    %801 = vmatprep.subr.bf16.mxu0 %v675
    %802 = vmatpush1.bf16.msra.mxu0 %v674
    %803 = vmatprep.subr.bf16.mxu0 %v673
    %804 = vmatpush1.bf16.msra.mxu0 %v672
    %805 = vmatprep.subr.bf16.mxu0 %v671
    %806 = vmatpush1.bf16.msra.mxu0 %v670
    %807 = vmatprep.subr.bf16.mxu0 %v669
    %808 = vmatpush1.bf16.msra.mxu0 %v668
    %809 = vmatprep.subr.bf16.mxu0 %v667
    %810 = vmatpush1.bf16.msra.mxu0 %v666
    %811 = vmatprep.subr.bf16.mxu0 %v665
    %812 = vmatpush1.bf16.msra.mxu0 %v664
    %813 = vmatprep.subr.bf16.mxu0 %v663
    %814 = vmatpush1.bf16.msra.mxu0 %v662
    %815 = vmatprep.subr.bf16.mxu0 %v693
    %816 = vmatpush2.bf16.msra.mxu0 %v692
    %817 = vmatprep.subr.bf16.mxu0 %v691
    %818 = vmatpush2.bf16.msra.mxu0 %v690
    %819 = vmatprep.subr.bf16.mxu0 %v689
    %820 = vmatpush2.bf16.msra.mxu0 %v688
    %821 = vmatprep.subr.bf16.mxu0 %v687
    %822 = vmatpush2.bf16.msra.mxu0 %v686
    %823 = vmatprep.subr.bf16.mxu0 %v685
    %824 = vmatpush2.bf16.msra.mxu0 %v684
    %825 = vmatprep.subr.bf16.mxu0 %v683
    %826 = vmatpush2.bf16.msra.mxu0 %v682
    %827 = vmatprep.subr.bf16.mxu0 %v681
    %828 = vmatpush2.bf16.msra.mxu0 %v680
    %829 = vmatprep.subr.bf16.mxu0 %v679
    %830 = vmatpush2.bf16.msra.mxu0 %v678
    %831 = vmatprep.mubr.bf16.mxu0 %v361
    %832 = vmatmul.mubr.bf16.gmra.mxu0 %v360
    %v833 = vpop.f32.mrf.mxu0
    %v834 = vadd.f32 %v793, %v833
    %v835 = vpop.f32.mrf.mxu0
    %v836 = vadd.f32 %v795, %v835
    %v837 = vpop.f32.mrf.mxu0
    %v838 = vpop.f32.mrf.mxu0
    %839 = vdwg.mxu0
    %v840 = vmax.f32 %v834, 0.0
    %v841 = vmax.f32 %v836, 0.0
    %v842 = vpack.c.bf16 %v840, %v840
    %v843 = vpack.c.bf16 %v841, %v841
    %v844 = vld [vmem:[#allocation2 + $0x8] sm:$0xf]
    %v845 = vld [vmem:[#allocation2 + $0x20] sm:$0xf]
    %v846 = vld [vmem:[#allocation2 + $0x38] sm:$0xf]
    %v847 = vld [vmem:[#allocation2 + $0x50] sm:$0xf]
    %v848 = vld [vmem:[#allocation2 + $0x68] sm:$0xf]
    %v849 = vld [vmem:[#allocation2 + $0x80] sm:$0xf]
    %v850 = vld [vmem:[#allocation2 + $0x98] sm:$0xf]
    %v851 = vld [vmem:[#allocation2 + $0xb0] sm:$0xf]
    %v852 = vld [vmem:[#allocation2 + $0xc8] sm:$0xf]
    %v853 = vld [vmem:[#allocation2 + $0xe0] sm:$0xf]
    %v854 = vld [vmem:[#allocation2 + $0xf8] sm:$0xf]
    %v855 = vld [vmem:[#allocation2 + $0x110] sm:$0xf]
    %v856 = vld [vmem:[#allocation2 + $0x128] sm:$0xf]
    %v857 = vld [vmem:[#allocation2 + $0x140] sm:$0xf]
    %v858 = vld [vmem:[#allocation2 + $0x158] sm:$0xf]
    %v859 = vld [vmem:[#allocation2 + $0x170] sm:$0xf]
    %v860 = vld [vmem:[#allocation2 + $0x188] sm:$0xf]
    %v861 = vld [vmem:[#allocation2 + $0x1a0] sm:$0xf]
    %v862 = vld [vmem:[#allocation2 + $0x1b8] sm:$0xf]
    %v863 = vld [vmem:[#allocation2 + $0x1d0] sm:$0xf]
    %v864 = vld [vmem:[#allocation2 + $0x1e8] sm:$0xf]
    %v865 = vld [vmem:[#allocation2 + $0x200] sm:$0xf]
    %v866 = vld [vmem:[#allocation2 + $0x218] sm:$0xf]
    %v867 = vld [vmem:[#allocation2 + $0x230] sm:$0xf]
    %v868 = vld [vmem:[#allocation2 + $0x248] sm:$0xf]
    %v869 = vld [vmem:[#allocation2 + $0x260] sm:$0xf]
    %v870 = vld [vmem:[#allocation2 + $0x278] sm:$0xf]
    %v871 = vld [vmem:[#allocation2 + $0x290] sm:$0xf]
    %v872 = vld [vmem:[#allocation2 + $0x2a8] sm:$0xf]
    %v873 = vld [vmem:[#allocation2 + $0x2c0] sm:$0xf]
    %v874 = vld [vmem:[#allocation2 + $0x2d8] sm:$0xf]
    %v875 = vld [vmem:[#allocation2 + $0x2f0] sm:$0xf]
    %v876 = vld [vmem:[#allocation5 + $0x6] sm:$0x1]
    %v878 = vlaneseq
    %v879 = vshrl.u32 %v878, 7
    %v880 = vsub.s32 0, %v879
    %v881 = vrot.slane %v876, %v880
    %v915 = vunpack.c.l.b16 %v844
    %v916 = vunpack.c.l.b16 %v845
    %v917 = vunpack.c.l.b16 %v846
    %v918 = vunpack.c.l.b16 %v847
    %v919 = vunpack.c.l.b16 %v848
    %v920 = vunpack.c.l.b16 %v849
    %v921 = vunpack.c.l.b16 %v850
    %v922 = vunpack.c.l.b16 %v851
    %v923 = vunpack.c.l.b16 %v852
    %v924 = vunpack.c.l.b16 %v853
    %v925 = vunpack.c.l.b16 %v854
    %v926 = vunpack.c.l.b16 %v855
    %v927 = vunpack.c.l.b16 %v856
    %v928 = vunpack.c.l.b16 %v857
    %v929 = vunpack.c.l.b16 %v858
    %v930 = vunpack.c.l.b16 %v859
    %v931 = vunpack.c.l.b16 %v860
    %v932 = vunpack.c.l.b16 %v861
    %v933 = vunpack.c.l.b16 %v862
    %v934 = vunpack.c.l.b16 %v863
    %v935 = vunpack.c.l.b16 %v864
    %v936 = vunpack.c.l.b16 %v865
    %v937 = vunpack.c.l.b16 %v866
    %v938 = vunpack.c.l.b16 %v867
    %v939 = vunpack.c.l.b16 %v868
    %v940 = vunpack.c.l.b16 %v869
    %v941 = vunpack.c.l.b16 %v870
    %v942 = vunpack.c.l.b16 %v871
    %v943 = vunpack.c.l.b16 %v872
    %v944 = vunpack.c.l.b16 %v873
    %v945 = vunpack.c.l.b16 %v874
    %v946 = vunpack.c.l.b16 %v875
    %v947 = vpack.c.b16 %v916, %v915
    %v948 = vpack.c.b16 %v918, %v917
    %v949 = vpack.c.b16 %v920, %v919
    %v950 = vpack.c.b16 %v922, %v921
    %v951 = vpack.c.b16 %v924, %v923
    %v952 = vpack.c.b16 %v926, %v925
    %v953 = vpack.c.b16 %v928, %v927
    %v954 = vpack.c.b16 %v930, %v929
    %v955 = vpack.c.b16 %v932, %v931
    %v956 = vpack.c.b16 %v934, %v933
    %v957 = vpack.c.b16 %v936, %v935
    %v958 = vpack.c.b16 %v938, %v937
    %v959 = vpack.c.b16 %v940, %v939
    %v960 = vpack.c.b16 %v942, %v941
    %v961 = vpack.c.b16 %v944, %v943
    %v962 = vpack.c.b16 %v946, %v945
    %979 = vmatprep.subr.bf16.mxu0 0
    %980 = vmatpush1.bf16.msra.mxu0 %v954
    %981 = vmatprep.subr.bf16.mxu0 0
    %982 = vmatpush1.bf16.msra.mxu0 %v953
    %983 = vmatprep.subr.bf16.mxu0 0
    %984 = vmatpush1.bf16.msra.mxu0 %v952
    %985 = vmatprep.subr.bf16.mxu0 0
    %986 = vmatpush1.bf16.msra.mxu0 %v951
    %987 = vmatprep.subr.bf16.mxu0 0
    %988 = vmatpush1.bf16.msra.mxu0 %v950
    %989 = vmatprep.subr.bf16.mxu0 0
    %990 = vmatpush1.bf16.msra.mxu0 %v949
    %991 = vmatprep.subr.bf16.mxu0 0
    %992 = vmatpush1.bf16.msra.mxu0 %v948
    %993 = vmatprep.subr.bf16.mxu0 0
    %994 = vmatpush1.bf16.msra.mxu0 %v947
    %995 = vmatprep.subr.bf16.mxu0 0
    %996 = vmatpush2.bf16.msra.mxu0 %v962
    %997 = vmatprep.subr.bf16.mxu0 0
    %998 = vmatpush2.bf16.msra.mxu0 %v961
    %999 = vmatprep.subr.bf16.mxu0 0
    %1000 = vmatpush2.bf16.msra.mxu0 %v960
    %1001 = vmatprep.subr.bf16.mxu0 0
    %1002 = vmatpush2.bf16.msra.mxu0 %v959
    %1003 = vmatprep.subr.bf16.mxu0 0
    %1004 = vmatpush2.bf16.msra.mxu0 %v958
    %1005 = vmatprep.subr.bf16.mxu0 0
    %1006 = vmatpush2.bf16.msra.mxu0 %v957
    %1007 = vmatprep.subr.bf16.mxu0 0
    %1008 = vmatpush2.bf16.msra.mxu0 %v956
    %1009 = vmatprep.subr.bf16.mxu0 0
    %1010 = vmatpush2.bf16.msra.mxu0 %v955
    %1011 = vmatprep.mubr.bf16.mxu0 %v843
    %1012 = vmatmul.mubr.bf16.gmra.mxu0 %v842
    %v1013 = vpop.f32.mrf.mxu0
    %v1014 = vadd.f32 %v881, %v1013
    %v1015 = vpop.f32.mrf.mxu0
    %v1016 = vpop.f32.mrf.mxu0
    %v1017 = vpop.f32.mrf.mxu0
    %1018 = vdwg.mxu0
    %v1019 = vmax.f32 %v1014, 0.0
    %v1020 = vpack.c.bf16 %v1019, %v1019
    %v1021 = vld [vmem:[#allocation2 + $0xc] sm:$0xf]
    %v1022 = vld [vmem:[#allocation2 + $0x24] sm:$0xf]
    %v1023 = vld [vmem:[#allocation2 + $0x3c] sm:$0xf]
    %v1024 = vld [vmem:[#allocation2 + $0x54] sm:$0xf]
    %v1025 = vld [vmem:[#allocation2 + $0x6c] sm:$0xf]
    %v1026 = vld [vmem:[#allocation2 + $0x84] sm:$0xf]
    %v1027 = vld [vmem:[#allocation2 + $0x9c] sm:$0xf]
    %v1028 = vld [vmem:[#allocation2 + $0xb4] sm:$0xf]
    %v1029 = vld [vmem:[#allocation2 + $0xcc] sm:$0xf]
    %v1030 = vld [vmem:[#allocation2 + $0xe4] sm:$0xf]
    %v1031 = vld [vmem:[#allocation2 + $0xfc] sm:$0xf]
    %v1032 = vld [vmem:[#allocation2 + $0x114] sm:$0xf]
    %v1033 = vld [vmem:[#allocation2 + $0x12c] sm:$0xf]
    %v1034 = vld [vmem:[#allocation2 + $0x144] sm:$0xf]
    %v1035 = vld [vmem:[#allocation2 + $0x15c] sm:$0xf]
    %v1036 = vld [vmem:[#allocation2 + $0x174] sm:$0xf]
    %v1037 = vld [vmem:[#allocation5 + $0x7] sm:$0x1]
    %v1039 = vlaneseq
    %v1040 = vshrl.u32 %v1039, 7
    %v1041 = vsub.s32 0, %v1040
    %v1042 = vrot.slane %v1037, %v1041
    %v1060 = vunpack.c.l.b16 %v1021
    %v1061 = vunpack.c.l.b16 %v1022
    %v1062 = vunpack.c.l.b16 %v1023
    %v1063 = vunpack.c.l.b16 %v1024
    %v1064 = vunpack.c.l.b16 %v1025
    %v1065 = vunpack.c.l.b16 %v1026
    %v1066 = vunpack.c.l.b16 %v1027
    %v1067 = vunpack.c.l.b16 %v1028
    %v1068 = vunpack.c.l.b16 %v1029
    %v1069 = vunpack.c.l.b16 %v1030
    %v1070 = vunpack.c.l.b16 %v1031
    %v1071 = vunpack.c.l.b16 %v1032
    %v1072 = vunpack.c.l.b16 %v1033
    %v1073 = vunpack.c.l.b16 %v1034
    %v1074 = vunpack.c.l.b16 %v1035
    %v1075 = vunpack.c.l.b16 %v1036
    %v1076 = vpack.c.b16 %v1061, %v1060
    %v1077 = vpack.c.b16 %v1063, %v1062
    %v1078 = vpack.c.b16 %v1065, %v1064
    %v1079 = vpack.c.b16 %v1067, %v1066
    %v1080 = vpack.c.b16 %v1069, %v1068
    %v1081 = vpack.c.b16 %v1071, %v1070
    %v1082 = vpack.c.b16 %v1073, %v1072
    %v1083 = vpack.c.b16 %v1075, %v1074
    %1092 = vmatprep.subr.bf16.mxu0 0
    %1093 = vmatpush1.bf16.msra.mxu0 %v1083
    %1094 = vmatprep.subr.bf16.mxu0 0
    %1095 = vmatpush1.bf16.msra.mxu0 %v1082
    %1096 = vmatprep.subr.bf16.mxu0 0
    %1097 = vmatpush1.bf16.msra.mxu0 %v1081
    %1098 = vmatprep.subr.bf16.mxu0 0
    %1099 = vmatpush1.bf16.msra.mxu0 %v1080
    %1100 = vmatprep.subr.bf16.mxu0 0
    %1101 = vmatpush1.bf16.msra.mxu0 %v1079
    %1102 = vmatprep.subr.bf16.mxu0 0
    %1103 = vmatpush1.bf16.msra.mxu0 %v1078
    %1104 = vmatprep.subr.bf16.mxu0 0
    %1105 = vmatpush1.bf16.msra.mxu0 %v1077
    %1106 = vmatprep.subr.bf16.mxu0 0
    %1107 = vmatpush1.bf16.msra.mxu0 %v1076
    %1108 = vmatprep.subr.bf16.mxu0 0
    %1109 = vmatpush2.bf16.msra.mxu0 0
    %1110 = vmatprep.subr.bf16.mxu0 0
    %1111 = vmatpush2.bf16.msra.mxu0 0
    %1112 = vmatprep.subr.bf16.mxu0 0
    %1113 = vmatpush2.bf16.msra.mxu0 0
    %1114 = vmatprep.subr.bf16.mxu0 0
    %1115 = vmatpush2.bf16.msra.mxu0 0
    %1116 = vmatprep.subr.bf16.mxu0 0
    %1117 = vmatpush2.bf16.msra.mxu0 0
    %1118 = vmatprep.subr.bf16.mxu0 0
    %1119 = vmatpush2.bf16.msra.mxu0 0
    %1120 = vmatprep.subr.bf16.mxu0 0
    %1121 = vmatpush2.bf16.msra.mxu0 0
    %1122 = vmatprep.subr.bf16.mxu0 0
    %1123 = vmatpush2.bf16.msra.mxu0 0
    %1124 = vmatprep.mubr.bf16.mxu0 0
    %1125 = vmatmul.mubr.bf16.gmra.mxu0 %v1020
    %v1126 = vpop.f32.mrf.mxu0
    %v1127 = vadd.f32 %v1042, %v1126
    %v1128 = vpop.f32.mrf.mxu0
    %v1129 = vpop.f32.mrf.mxu0
    %v1130 = vpop.f32.mrf.mxu0
    %1131 = vdwg.mxu0
    %v1132 = vmax.f32 %v1127, 0.0
    %v1133 = vrot.slane %v1132, 4
    %v1134 = vadd.f32 %v1132, %v1133
    %v1135 = vrot.slane %v1134, 2
    %v1136 = vadd.f32 %v1134, %v1135
    %v1137 = vrot.slane %v1136, 1
    %v1138 = vadd.f32 %v1136, %v1137
    %v1139 = vmul.f32 %v1132, %v1132
    %v1140 = vrot.slane %v1139, 4
    %v1141 = vadd.f32 %v1139, %v1140
    %v1142 = vrot.slane %v1141, 2
    %v1143 = vadd.f32 %v1141, %v1142
    %v1144 = vrot.slane %v1143, 1
    %v1145 = vadd.f32 %v1143, %v1144
    %v1146 = vmul.f32 %v1138, 0.125
    %v1147 = vmul.f32 %v1145, 0.125
    %v1148 = vmul.f32 %v1146, %v1146
    %v1149 = vsub.f32 %v1147, %v1148
    %v1150 = vmax.f32 %v1149, 0.0
    %v1151 = vadd.f32 %v1150, 1e-05
    %v1152 = vrsqrt.pop %v1151
    %v1153 = vld [vmem:[#allocation5 + $0x12] sm:$0x1]
    %v1154 = vmul.f32 %v1152, %v1153
    %v1155 = vld [vmem:[#allocation5 + $0x13] sm:$0x1]
    %v1156 = vmul.f32 %v1146, %v1154
    %v1157 = vsub.f32 %v1155, %v1156
    %v1158 = vlaneseq
    %v1159 = vshrl.u32 %v1158, 7
    %v1160 = vsub.s32 0, %v1159
    %v1161 = vrot.slane %v1154, %v1160
    %v1162 = vmul.f32 %v1132, %v1161
    %v1164 = vlaneseq
    %v1165 = vshrl.u32 %v1164, 7
    %v1166 = vsub.s32 0, %v1165
    %v1167 = vrot.slane %v1157, %v1166
    %v1169 = vadd.f32 %v1162, %v1167
    %v1170 = vpack.c.bf16 %v1169, %v1169
    %v1171 = vld [vmem:[#allocation2 + $0x10] sm:$0xf]
    %v1172 = vld [vmem:[#allocation2 + $0x28] sm:$0xf]
    %v1173 = vld [vmem:[#allocation2 + $0x40] sm:$0xf]
    %v1174 = vld [vmem:[#allocation2 + $0x58] sm:$0xf]
    %v1175 = vld [vmem:[#allocation2 + $0x70] sm:$0xf]
    %v1176 = vld [vmem:[#allocation2 + $0x88] sm:$0xf]
    %v1177 = vld [vmem:[#allocation2 + $0xa0] sm:$0xf]
    %v1178 = vld [vmem:[#allocation2 + $0xb8] sm:$0xf]
    %v1179 = vld [vmem:[#allocation2 + $0xd0] sm:$0xf]
    %v1180 = vld [vmem:[#allocation2 + $0xe8] sm:$0xf]
    %v1181 = vld [vmem:[#allocation2 + $0x100] sm:$0xf]
    %v1182 = vld [vmem:[#allocation2 + $0x118] sm:$0xf]
    %v1183 = vld [vmem:[#allocation2 + $0x130] sm:$0xf]
    %v1184 = vld [vmem:[#allocation2 + $0x148] sm:$0xf]
    %v1185 = vld [vmem:[#allocation2 + $0x160] sm:$0xf]
    %v1186 = vld [vmem:[#allocation2 + $0x178] sm:$0xf]
    %v1187 = vld [vmem:[#allocation5 + $0x8] sm:$0x1]
    %v1189 = vlaneseq
    %v1190 = vshrl.u32 %v1189, 7
    %v1191 = vsub.s32 0, %v1190
    %v1192 = vrot.slane %v1187, %v1191
    %v1210 = vunpack.c.l.b16 %v1171
    %v1211 = vunpack.c.l.b16 %v1172
    %v1212 = vunpack.c.l.b16 %v1173
    %v1213 = vunpack.c.l.b16 %v1174
    %v1214 = vunpack.c.l.b16 %v1175
    %v1215 = vunpack.c.l.b16 %v1176
    %v1216 = vunpack.c.l.b16 %v1177
    %v1217 = vunpack.c.l.b16 %v1178
    %v1218 = vunpack.c.l.b16 %v1179
    %v1219 = vunpack.c.l.b16 %v1180
    %v1220 = vunpack.c.l.b16 %v1181
    %v1221 = vunpack.c.l.b16 %v1182
    %v1222 = vunpack.c.l.b16 %v1183
    %v1223 = vunpack.c.l.b16 %v1184
    %v1224 = vunpack.c.l.b16 %v1185
    %v1225 = vunpack.c.l.b16 %v1186
    %v1226 = vpack.c.b16 %v1211, %v1210
    %v1227 = vpack.c.b16 %v1213, %v1212
    %v1228 = vpack.c.b16 %v1215, %v1214
    %v1229 = vpack.c.b16 %v1217, %v1216
    %v1230 = vpack.c.b16 %v1219, %v1218
    %v1231 = vpack.c.b16 %v1221, %v1220
    %v1232 = vpack.c.b16 %v1223, %v1222
    %v1233 = vpack.c.b16 %v1225, %v1224
    %1242 = vmatprep.subr.bf16.mxu0 0
    %1243 = vmatpush1.bf16.msra.mxu0 %v1233
    %1244 = vmatprep.subr.bf16.mxu0 0
    %1245 = vmatpush1.bf16.msra.mxu0 %v1232
    %1246 = vmatprep.subr.bf16.mxu0 0
    %1247 = vmatpush1.bf16.msra.mxu0 %v1231
    %1248 = vmatprep.subr.bf16.mxu0 0
    %1249 = vmatpush1.bf16.msra.mxu0 %v1230
    %1250 = vmatprep.subr.bf16.mxu0 0
    %1251 = vmatpush1.bf16.msra.mxu0 %v1229
    %1252 = vmatprep.subr.bf16.mxu0 0
    %1253 = vmatpush1.bf16.msra.mxu0 %v1228
    %1254 = vmatprep.subr.bf16.mxu0 0
    %1255 = vmatpush1.bf16.msra.mxu0 %v1227
    %1256 = vmatprep.subr.bf16.mxu0 0
    %1257 = vmatpush1.bf16.msra.mxu0 %v1226
    %1258 = vmatprep.subr.bf16.mxu0 0
    %1259 = vmatpush2.bf16.msra.mxu0 0
    %1260 = vmatprep.subr.bf16.mxu0 0
    %1261 = vmatpush2.bf16.msra.mxu0 0
    %1262 = vmatprep.subr.bf16.mxu0 0
    %1263 = vmatpush2.bf16.msra.mxu0 0
    %1264 = vmatprep.subr.bf16.mxu0 0
    %1265 = vmatpush2.bf16.msra.mxu0 0
    %1266 = vmatprep.subr.bf16.mxu0 0
    %1267 = vmatpush2.bf16.msra.mxu0 0
    %1268 = vmatprep.subr.bf16.mxu0 0
    %1269 = vmatpush2.bf16.msra.mxu0 0
    %1270 = vmatprep.subr.bf16.mxu0 0
    %1271 = vmatpush2.bf16.msra.mxu0 0
    %1272 = vmatprep.subr.bf16.mxu0 0
    %1273 = vmatpush2.bf16.msra.mxu0 0
    %1274 = vmatprep.mubr.bf16.mxu0 0
    %1275 = vmatmul.mubr.bf16.gmra.mxu0 %v1170
    %v1276 = vpop.f32.mrf.mxu0
    %v1277 = vadd.f32 %v1192, %v1276
    %v1278 = vpop.f32.mrf.mxu0
    %v1279 = vpop.f32.mrf.mxu0
    %v1280 = vpop.f32.mrf.mxu0
    %1281 = vdwg.mxu0
    %v1282 = vmax.f32 %v1277, 0.0
    %v1283 = vpack.c.bf16 %v1282, %v1282
    %v1284 = vld [vmem:[#allocation2 + $0x14] sm:$0xf]
    %v1285 = vld [vmem:[#allocation2 + $0x2c] sm:$0xf]
    %v1286 = vld [vmem:[#allocation2 + $0x44] sm:$0xf]
    %v1287 = vld [vmem:[#allocation2 + $0x5c] sm:$0xf]
    %v1288 = vld [vmem:[#allocation2 + $0x74] sm:$0xf]
    %v1289 = vld [vmem:[#allocation2 + $0x8c] sm:$0xf]
    %v1290 = vld [vmem:[#allocation2 + $0xa4] sm:$0xf]
    %v1291 = vld [vmem:[#allocation2 + $0xbc] sm:$0xf]
    %v1292 = vld [vmem:[#allocation2 + $0xd4] sm:$0xf]
    %v1293 = vld [vmem:[#allocation2 + $0xec] sm:$0xf]
    %v1294 = vld [vmem:[#allocation2 + $0x104] sm:$0xf]
    %v1295 = vld [vmem:[#allocation2 + $0x11c] sm:$0xf]
    %v1296 = vld [vmem:[#allocation2 + $0x134] sm:$0xf]
    %v1297 = vld [vmem:[#allocation2 + $0x14c] sm:$0xf]
    %v1298 = vld [vmem:[#allocation2 + $0x164] sm:$0xf]
    %v1299 = vld [vmem:[#allocation2 + $0x17c] sm:$0xf]
    %v1300 = vld [vmem:[#allocation5 + $0x9] sm:$0x1]
    %v1302 = vlaneseq
    %v1303 = vshrl.u32 %v1302, 7
    %v1304 = vsub.s32 0, %v1303
    %v1305 = vrot.slane %v1300, %v1304
    %v1323 = vunpack.c.l.b16 %v1284
    %v1324 = vunpack.c.l.b16 %v1285
    %v1325 = vunpack.c.l.b16 %v1286
    %v1326 = vunpack.c.l.b16 %v1287
    %v1327 = vunpack.c.l.b16 %v1288
    %v1328 = vunpack.c.l.b16 %v1289
    %v1329 = vunpack.c.l.b16 %v1290
    %v1330 = vunpack.c.l.b16 %v1291
    %v1331 = vunpack.c.l.b16 %v1292
    %v1332 = vunpack.c.l.b16 %v1293
    %v1333 = vunpack.c.l.b16 %v1294
    %v1334 = vunpack.c.l.b16 %v1295
    %v1335 = vunpack.c.l.b16 %v1296
    %v1336 = vunpack.c.l.b16 %v1297
    %v1337 = vunpack.c.l.b16 %v1298
    %v1338 = vunpack.c.l.b16 %v1299
    %v1339 = vpack.c.b16 %v1324, %v1323
    %v1340 = vpack.c.b16 %v1326, %v1325
    %v1341 = vpack.c.b16 %v1328, %v1327
    %v1342 = vpack.c.b16 %v1330, %v1329
    %v1343 = vpack.c.b16 %v1332, %v1331
    %v1344 = vpack.c.b16 %v1334, %v1333
    %v1345 = vpack.c.b16 %v1336, %v1335
    %v1346 = vpack.c.b16 %v1338, %v1337
    %1355 = vmatprep.subr.bf16.mxu0 0
    %1356 = vmatpush1.bf16.msra.mxu0 %v1346
    %1357 = vmatprep.subr.bf16.mxu0 0
    %1358 = vmatpush1.bf16.msra.mxu0 %v1345
    %1359 = vmatprep.subr.bf16.mxu0 0
    %1360 = vmatpush1.bf16.msra.mxu0 %v1344
    %1361 = vmatprep.subr.bf16.mxu0 0
    %1362 = vmatpush1.bf16.msra.mxu0 %v1343
    %1363 = vmatprep.subr.bf16.mxu0 0
    %1364 = vmatpush1.bf16.msra.mxu0 %v1342
    %1365 = vmatprep.subr.bf16.mxu0 0
    %1366 = vmatpush1.bf16.msra.mxu0 %v1341
    %1367 = vmatprep.subr.bf16.mxu0 0
    %1368 = vmatpush1.bf16.msra.mxu0 %v1340
    %1369 = vmatprep.subr.bf16.mxu0 0
    %1370 = vmatpush1.bf16.msra.mxu0 %v1339
    %1371 = vmatprep.subr.bf16.mxu0 0
    %1372 = vmatpush2.bf16.msra.mxu0 0
    %1373 = vmatprep.subr.bf16.mxu0 0
    %1374 = vmatpush2.bf16.msra.mxu0 0
    %1375 = vmatprep.subr.bf16.mxu0 0
    %1376 = vmatpush2.bf16.msra.mxu0 0
    %1377 = vmatprep.subr.bf16.mxu0 0
    %1378 = vmatpush2.bf16.msra.mxu0 0
    %1379 = vmatprep.subr.bf16.mxu0 0
    %1380 = vmatpush2.bf16.msra.mxu0 0
    %1381 = vmatprep.subr.bf16.mxu0 0
    %1382 = vmatpush2.bf16.msra.mxu0 0
    %1383 = vmatprep.subr.bf16.mxu0 0
    %1384 = vmatpush2.bf16.msra.mxu0 0
    %1385 = vmatprep.subr.bf16.mxu0 0
    %1386 = vmatpush2.bf16.msra.mxu0 0
    %1387 = vmatprep.mubr.bf16.mxu0 0
    %1388 = vmatmul.mubr.bf16.gmra.mxu0 %v1283
    %v1389 = vpop.f32.mrf.mxu0
    %v1390 = vadd.f32 %v1305, %v1389
    %v1391 = vpop.f32.mrf.mxu0
    %v1392 = vpop.f32.mrf.mxu0
    %v1393 = vpop.f32.mrf.mxu0
    %1394 = vdwg.mxu0
    %1395 = vst [vmem:[#allocation7] sm:$0xff] %v1390
    // Predicated region
    $region22: #{tpu_custom_call.1} parent=1 // pred_check
      _
    $region23: #{tpu_custom_call.1} parent=1 // pred_check_branch
      %1397 = sbr.rel (0) target = $region25
    $region24: #{tpu_custom_call.1} parent=1 // pred_region
      %s1399 = ssub.s32 128, 128
      %1400 = vsyncadd [#allocation4], %s1399
      %s1402 = sshll.u32 [#allocation7], 4
      %s1403 = int_to_ptr.vmem [resolvable:$true] %s1402
      %1405 = dma.vmem_to_hbm [thread:$0]  %s1403, 128, %s3, [#allocation4]
    $region25: #{tpu_custom_call.1} parent=1 // pred_fallthru
      _
    // Predicated region
    $region26: #{tpu_custom_call.1} parent=1 // pred_check
      _
    $region27: #{tpu_custom_call.1} parent=1 // pred_check_branch
      %1407 = sbr.rel (0) target = $region29
    $region28: #{tpu_custom_call.1} parent=1 // pred_region
      %1408 = dma.done [#allocation4], 128
    $region29: #{tpu_custom_call.1} parent=1 // pred_fallthru
      _
    %1409 = vsyncpa [#allocation3], 1
    %1410 = vsyncpa [#allocation6], 1
    %1411 = vsyncpa [#allocation4], 1

</llo_original>
